<compile_context>
chip_gen: v5e
topology: v5e:2x2
jax: 0.10.0
libtpu: 0.0.40
codegen_flags: <defaults>
</compile_context>

<pallas_src>
import jax
import jax.numpy as jnp
from jax.experimental import pallas as pl
from jax.experimental.pallas import tpu as pltpu


def mlp_head_kernel(x_ref, w_ref, b_ref, o_ref):
    # x_ref: (tb, E)   w_ref: (E, Cp)   b_ref: (1, Cp) f32   o_ref: (tb, Cp)
    x = x_ref[...].astype(jnp.float32)

    # LayerNorm statistics in f32 (eps matches torch.nn.LayerNorm default).
    mean = jnp.mean(x, axis=-1, keepdims=True)
    centered = x - mean
    var = jnp.mean(centered * centered, axis=-1, keepdims=True)
    x_norm = centered * jax.lax.rsqrt(var + 1e-5)

    # Affine is folded into w/b -> straight to the MXU in the param dtype,
    # f32 accumulation.
    out = jnp.dot(x_norm.astype(w_ref.dtype), w_ref[...],
                  preferred_element_type=jnp.float32)
    out = out + b_ref[...]
    o_ref[...] = out.astype(o_ref.dtype)


def _round_up(n, m):
    return ((n + m - 1) // m) * m


def mlp_head(x, gamma, beta, weight, bias, *, block_b=256):
    """x: (B, S, E); gamma/beta: (E,); weight: (C, E) PyTorch layout; bias: (C,)."""
    B, S, E = x.shape
    C = weight.shape[0]
    dtype = x.dtype

    # CLS token (glue slice, tiny).
    x_cls = x[:, 0, :]                                        # (B, E)

    # Fold LayerNorm affine into the linear layer (static, one-time cost).
    w_folded = (weight * gamma[None, :]).T.astype(dtype)      # (E, C)
    b_folded = (weight.astype(jnp.float32) @ beta.astype(jnp.float32)
                + bias.astype(jnp.float32))                   # (C,) f32

    # Lane-dense output: pad C to a multiple of 128. 8-aligned batch tile.
    Cp = _round_up(C, 128)
    tb = min(block_b, _round_up(B, 8))
    Bp = _round_up(B, tb)

    w_p = jnp.zeros((E, Cp), dtype).at[:, :C].set(w_folded)
    b_p = jnp.zeros((1, Cp), jnp.float32).at[0, :C].set(b_folded)
    if Bp == B:
        x_p = x_cls
    else:
        x_p = jnp.zeros((Bp, E), dtype).at[:B, :].set(x_cls)

    grid = (Bp // tb,)

    out = pl.pallas_call(
        mlp_head_kernel,
        out_shape=jax.ShapeDtypeStruct((Bp, Cp), dtype),
        grid_spec=pltpu.PrefetchScalarGridSpec(
            num_scalar_prefetch=0,
            grid=grid,
            in_specs=[
                pl.BlockSpec((tb, E), lambda i: (i, 0)),      # activations: tiled over B
                pl.BlockSpec((E, Cp), lambda i: (0, 0)),      # folded weight: resident
                pl.BlockSpec((1, Cp), lambda i: (0, 0)),      # folded bias: resident
            ],
            out_specs=pl.BlockSpec((tb, Cp), lambda i: (i, 0)),
        ),
        compiler_params=pltpu.CompilerParams(
            dimension_semantics=("parallel",),                # megacore sharding on v7x
            vmem_limit_bytes=64 * 1024 * 1024,                # sized for v7x's 64 MiB
        ),
    )(x_p, w_p, b_p)

    # Slice off batch/class padding.
    return out[:B, :C]


def mlp_head_ref(x, gamma, beta, weight, bias):
    x_cls = x[:, 0, :]
    mean = jnp.mean(x_cls, axis=-1, keepdims=True)
    var = jnp.mean((x_cls - mean) ** 2, axis=-1, keepdims=True)
    xn = (x_cls - mean) / jnp.sqrt(var + 1e-5)
    y = xn * gamma + beta
    return y @ weight.T + bias


if __name__ == "__main__":
    # Small shapes consistent with the module: batch=2, seq=8, emb_dim=32, class_num=5
    B, S, E, C = 2, 8, 32, 5
    key = jax.random.PRNGKey(0)
    kx, kw, kb, kg, kbe = jax.random.split(key, 5)

    x = jax.random.normal(kx, (B, S, E), dtype=jnp.float32)

    # Non-trivial LayerNorm affine so the weight-fold path is exercised.
    gamma = 1.0 + 0.1 * jax.random.normal(kg, (E,), dtype=jnp.float32)
    beta = 0.1 * jax.random.normal(kbe, (E,), dtype=jnp.float32)
    bound = 1.0 / (E ** 0.5)
    weight = jax.random.uniform(kw, (C, E), minval=-bound, maxval=bound,
                                dtype=jnp.float32)
    bias = jax.random.uniform(kb, (C,), minval=-bound, maxval=bound,
                              dtype=jnp.float32)

    out = mlp_head(x, gamma, beta, weight, bias)
    out = jax.block_until_ready(out)

    ref = mlp_head_ref(x, gamma, beta, weight, bias)
    assert out.shape == (B, C)
    assert jnp.allclose(out, ref, atol=1e-4, rtol=1e-4)

    print("KERNEL_OK")
</pallas_src>

<mosaic_0001>
module attributes {stable_mosaic.version = 11 : i64} {
  func.func @mlp_head_kernel(%arg0: i32, %arg1: memref<8x32xf32, #tpu.memory_space<vmem>>, %arg2: memref<32x128xf32, #tpu.memory_space<vmem>>, %arg3: memref<1x128xf32, #tpu.memory_space<vmem>>, %arg4: memref<8x128xf32, #tpu.memory_space<vmem>>) attributes {dimension_semantics = [#tpu.dimension_semantics<parallel>], iteration_bounds = array<i64: 1>, scalar_prefetch = 0 : i64, scratch_operands = 0 : i64, tpu.core_type = #tpu.core_type<tc>, window_params = [{transform_indices = @transform_0, window_bounds = array<i64: 8, 32>}, {pipeline_mode = #tpu.pipeline_mode<synchronous>, transform_indices = @transform_1, window_bounds = array<i64: 32, 128>}, {pipeline_mode = #tpu.pipeline_mode<synchronous>, transform_indices = @transform_2, window_bounds = array<i64: 1, 128>}, {transform_indices = @transform_3, window_bounds = array<i64: 8, 128>}]} {
    %c0 = arith.constant 0 : index
    %c0_0 = arith.constant 0 : index
    %0 = vector.load %arg1[%c0, %c0_0] : memref<8x32xf32, #tpu.memory_space<vmem>>, vector<8x32xf32>
    %cst = arith.constant dense<0.000000e+00> : vector<8xf32>
    %1 = vector.multi_reduction <add>, %0, %cst [1] : vector<8x32xf32> to vector<8xf32>
    %2 = vector.shape_cast %1 : vector<8xf32> to vector<8x1xf32>
    %cst_1 = arith.constant 3.200000e+01 : f32
    %3 = vector.broadcast %cst_1 : f32 to vector<8x1xf32>
    %4 = arith.divf %2, %3 : vector<8x1xf32>
    %5 = vector.broadcast %4 : vector<8x1xf32> to vector<8x32xf32>
    %6 = arith.subf %0, %5 : vector<8x32xf32>
    %7 = arith.mulf %6, %6 : vector<8x32xf32>
    %cst_2 = arith.constant dense<0.000000e+00> : vector<8xf32>
    %8 = vector.multi_reduction <add>, %7, %cst_2 [1] : vector<8x32xf32> to vector<8xf32>
    %9 = vector.shape_cast %8 : vector<8xf32> to vector<8x1xf32>
    %cst_3 = arith.constant 3.200000e+01 : f32
    %10 = vector.broadcast %cst_3 : f32 to vector<8x1xf32>
    %11 = arith.divf %9, %10 : vector<8x1xf32>
    %cst_4 = arith.constant 9.99999974E-6 : f32
    %12 = vector.broadcast %cst_4 : f32 to vector<8x1xf32>
    %13 = arith.addf %11, %12 : vector<8x1xf32>
    %14 = math.rsqrt %13 : vector<8x1xf32>
    %15 = vector.broadcast %14 : vector<8x1xf32> to vector<8x32xf32>
    %16 = arith.mulf %6, %15 : vector<8x32xf32>
    %c0_5 = arith.constant 0 : index
    %c0_6 = arith.constant 0 : index
    %17 = vector.load %arg2[%c0_5, %c0_6] : memref<32x128xf32, #tpu.memory_space<vmem>>, vector<32x128xf32>
    %cst_7 = arith.constant dense<0.000000e+00> : vector<8x128xf32>
    %18 = tpu.matmul %16, %17, %cst_7 {dimension_numbers = #tpu.dot_dimension_numbers<[1], [0], [0], [1], [0, 0, 1, 1], [], []>} : vector<8x32xf32>, vector<32x128xf32>, vector<8x128xf32> -> vector<8x128xf32>
    %c0_8 = arith.constant 0 : index
    %c0_9 = arith.constant 0 : index
    %19 = vector.load %arg3[%c0_8, %c0_9] : memref<1x128xf32, #tpu.memory_space<vmem>>, vector<1x128xf32>
    %20 = vector.broadcast %19 : vector<1x128xf32> to vector<8x128xf32>
    %21 = arith.addf %18, %20 : vector<8x128xf32>
    %c0_10 = arith.constant 0 : index
    %c0_11 = arith.constant 0 : index
    %22 = vector.load %arg4[%c0_10, %c0_11] : memref<8x128xf32, #tpu.memory_space<vmem>>, vector<8x128xf32>
    tpu.vector_store %arg4[%c0_10, %c0_11], %21 {strides = array<i32>} : memref<8x128xf32, #tpu.memory_space<vmem>>, vector<8x128xf32>,
    return
  }
  func.func @transform_0(%arg0: i32) -> (i32, i32) {
    %c0_i32 = arith.constant 0 : i32
    %c0_i32_0 = arith.constant 0 : i32
    return %arg0, %c0_i32 : i32, i32
  }
  func.func @transform_1(%arg0: i32) -> (i32, i32) {
    %c0_i32 = arith.constant 0 : i32
    %c0_i32_0 = arith.constant 0 : i32
    %c0_i32_1 = arith.constant 0 : i32
    return %c0_i32, %c0_i32_0 : i32, i32
  }
  func.func @transform_2(%arg0: i32) -> (i32, i32) {
    %c0_i32 = arith.constant 0 : i32
    %c0_i32_0 = arith.constant 0 : i32
    %c0_i32_1 = arith.constant 0 : i32
    return %c0_i32, %c0_i32_0 : i32, i32
  }
  func.func @transform_3(%arg0: i32) -> (i32, i32) {
    %c0_i32 = arith.constant 0 : i32
    %c0_i32_0 = arith.constant 0 : i32
    return %arg0, %c0_i32 : i32, i32
  }
}

</mosaic_0001>

<llo_original>
// kernel: tpu_custom_call.1
$region0: #{tpu_custom_call.1}
  #allocation0 [shape = 'u32[]', space=smem, size = 0x4, offset = 0x4, fixed_abs, tag = 'smem constant byte address 0x4 - core index']
  #allocation1 [shape = 'u32[72,128]{1,0:T(1,128)}', space=vmem, size = 0x9000, scoped, tag = 'internal scratch']
  %s0 = inlined_call_operand.hbm [shape: f32[8,32], index: 0, kind: input, shape index: {}]
  %s1 = inlined_call_operand.hbm [shape: f32[32,128], index: 1, kind: input, shape index: {}]
  %s2 = inlined_call_operand.vmem [shape: f32[1,128], index: 2, kind: input, shape index: {}]
  %s3 = inlined_call_operand.hbm [shape: f32[8,128], index: 3, kind: output, shape index: {}]
  %s4 = sld [smem:[#allocation0]]
  $region30: #{tpu_custom_call.1} parent=0
    _
  %s6 = ssub.s32 1, %s4
  %s7 = scalar_select 0, %s6, %s4
  $region1: #{tpu_custom_call.1} parent=0
    #allocation2 [shape = 'u8[4096]{0}', space=vmem, size = 0x1000, scoped, tag = 'input window, operand 0, single buffered']
    #allocation3 [shape = 's32[1]{0}', space=sflag, size = 0x4, scoped, tag = 'scoped memory for tpu_custom_call.1']
    #allocation4 [shape = 's32[1]{0}', space=sflag, size = 0x4, scoped, tag = 'scoped memory for tpu_custom_call.1']
    #allocation5 [shape = 'u8[16384]{0}', space=vmem, size = 0x4000, scoped, tag = 'input window, operand 1, single buffered']
    #allocation6 [shape = 's32[1]{0}', space=sflag, size = 0x4, scoped, tag = 'scoped memory for tpu_custom_call.1']
    #allocation7 [shape = 'u8[4096]{0}', space=vmem, size = 0x1000, scoped, tag = 'output window, operand 0, single buffered']
    %8 = vsyncpa [#allocation3], 0
    %9 = vsyncpa [#allocation6], 0
    %10 = vsyncpa [#allocation4], 0
    // Predicated region
    $region2: #{tpu_custom_call.1} parent=1 // pred_check
      _
    $region3: #{tpu_custom_call.1} parent=1 // pred_check_branch
      %12 = sbr.rel (0) target = $region5
    $region4: #{tpu_custom_call.1} parent=1 // pred_region
      %14 = vsyncadd [#allocation3], 0
      %s16 = sshll.u32 %s0, 4
      %s17 = int_to_ptr.hbm [resolvable:$true] %s16
      %s18 = sshll.u32 [#allocation2], 4
      %s19 = int_to_ptr.vmem [resolvable:$true] %s18
      %21 = dma.hbm_to_vmem [thread:$0]  %s17, 128, %s19, [#allocation3]
    $region5: #{tpu_custom_call.1} parent=1 // pred_fallthru
      _
    // Predicated region
    $region6: #{tpu_custom_call.1} parent=1 // pred_check
      _
    $region7: #{tpu_custom_call.1} parent=1 // pred_check_branch
      %23 = sbr.rel (0) target = $region9
    $region8: #{tpu_custom_call.1} parent=1 // pred_region
      %25 = vsyncadd [#allocation6], 0
      %s26 = sshll.u32 %s1, 4
      %s27 = int_to_ptr.hbm [resolvable:$true] %s26
      %s28 = sshll.u32 [#allocation5], 4
      %s29 = int_to_ptr.vmem [resolvable:$true] %s28
      %34 = dma.hbm_to_vmem [thread:$0]  %s27, 512, %s29, [#allocation6], 128, 128, 8
    $region9: #{tpu_custom_call.1} parent=1 // pred_fallthru
      _
    // Predicated region
    $region10: #{tpu_custom_call.1} parent=1 // pred_check
      _
    $region11: #{tpu_custom_call.1} parent=1 // pred_check_branch
      %36 = sbr.rel (0) target = $region13
    $region12: #{tpu_custom_call.1} parent=1 // pred_region
      _
    $region13: #{tpu_custom_call.1} parent=1 // pred_fallthru
      _
    // Predicated region
    $region14: #{tpu_custom_call.1} parent=1 // pred_check
      _
    $region15: #{tpu_custom_call.1} parent=1 // pred_check_branch
      %38 = sbr.rel (0) target = $region17
    $region16: #{tpu_custom_call.1} parent=1 // pred_region
      %40 = dma.done [#allocation3], 128
    $region17: #{tpu_custom_call.1} parent=1 // pred_fallthru
      _
    // Predicated region
    $region18: #{tpu_custom_call.1} parent=1 // pred_check
      _
    $region19: #{tpu_custom_call.1} parent=1 // pred_check_branch
      %42 = sbr.rel (0) target = $region21
    $region20: #{tpu_custom_call.1} parent=1 // pred_region
      %44 = dma.done [#allocation6], 512
    $region21: #{tpu_custom_call.1} parent=1 // pred_fallthru
      _
    %v45 = vld [vmem:[#allocation2] sm:$0xff]
    %vm46 = vcmask 261120
    %v47 = vsel %vm46, %v45, 0.0
    %48 = vadd.xlane.f32.xlu0 %v47
    %v49 = vpop.xlane.xlu0 %48
    %v50 = vrcp.pop 32.0
    %v51 = vmul.f32 32.0, %v50
    %v52 = vsub.f32 1.0, %v51
    %v53 = vmul.f32 %v50, %v52
    %v54 = vadd.f32 %v50, %v53
    %vm55 = vweird.f32 %v50
    %v56 = vsel %vm55, %v50, %v54
    %v57 = vmul.f32 %v49, %v56
    %v58 = vsub.f32 %v45, %v57
    %v59 = vmul.f32 %v58, %v58
    %v60 = vsel %vm46, %v59, 0.0
    %61 = vadd.xlane.f32.xlu0 %v60
    %v62 = vpop.xlane.xlu0 %61
    %v63 = vmul.f32 %v62, %v56
    %v64 = vadd.f32 %v63, 1e-05
    %v65 = vrsqrt.pop %v64
    %v66 = vmul.f32 %v65, %v64
    %v67 = vmul.f32 %v66, %v65
    %v68 = vmul.f32 0.5, %v67
    %v69 = vsub.f32 1.5, %v68
    %v70 = vmul.f32 %v65, %v69
    %vm71 = vweird.f32 %v64
    %vm72 = vweird.f32 %v65
    %vm73 = vmor %vm71, %vm72
    %v74 = vsel %vm73, %v65, %v70
    %v75 = vmul.f32 %v58, %v74
    %v76 = vld [vmem:[#allocation5] sm:$0xff]
    %v77 = vld [vmem:[#allocation5 + $0x8] sm:$0xff]
    %v78 = vld [vmem:[#allocation5 + $0x10] sm:$0xff]
    %v79 = vld [vmem:[#allocation5 + $0x18] sm:$0xff]
    %v80 = vld [vmem:[%s2] sm:$0x1]
    %v82 = vperm.slane %v80, 0
    %v85 = vsel %vm46, %v75, 0
    %87 = vmatpush.msra.mxu0 0.0
    %88 = vmatpush.msra.mxu0 0.0
    %89 = vmatpush.msra.mxu0 0.0
    %90 = vmatpush.msra.mxu0 0.0
    %91 = vmatpush.msra.mxu0 0.0
    %92 = vmatpush.msra.mxu0 0.0
    %93 = vmatpush.msra.mxu0 0.0
    %94 = vmatpush.msra.mxu0 0.0
    %95 = vmatpush.msra.mxu0 0.0
    %96 = vmatpush.msra.mxu0 0.0
    %97 = vmatpush.msra.mxu0 0.0
    %98 = vmatpush.msra.mxu0 0.0
    %99 = vmatpush.msra.mxu0 %v79
    %100 = vmatpush.msra.mxu0 %v78
    %101 = vmatpush.msra.mxu0 %v77
    %102 = vmatpush.msra.mxu0 %v76
    %103 = vmatmul.f32.gmra.mxu0 %v85
    %v104 = vpop.f32.mrf.mxu0
    %v105 = vadd.f32 %v82, %v104
    %106 = vdwg.mxu0
    %107 = vst [vmem:[#allocation7] sm:$0xff] %v105
    // Predicated region
    $region22: #{tpu_custom_call.1} parent=1 // pred_check
      _
    $region23: #{tpu_custom_call.1} parent=1 // pred_check_branch
      %109 = sbr.rel (0) target = $region25
    $region24: #{tpu_custom_call.1} parent=1 // pred_region
      %111 = vsyncadd [#allocation4], 0
      %s113 = sshll.u32 [#allocation7], 4
      %s114 = int_to_ptr.vmem [resolvable:$true] %s113
      %s115 = sshll.u32 %s3, 4
      %s116 = int_to_ptr.hbm [resolvable:$true] %s115
      %118 = dma.vmem_to_hbm [thread:$0]  %s114, 128, %s116, [#allocation4]
    $region25: #{tpu_custom_call.1} parent=1 // pred_fallthru
      _
    // Predicated region
    $region26: #{tpu_custom_call.1} parent=1 // pred_check
      _
    $region27: #{tpu_custom_call.1} parent=1 // pred_check_branch
      %120 = sbr.rel (0) target = $region29
    $region28: #{tpu_custom_call.1} parent=1 // pred_region
      %122 = dma.done [#allocation4], 128
    $region29: #{tpu_custom_call.1} parent=1 // pred_fallthru
      _
    %123 = vsyncpa [#allocation3], 1
    %124 = vsyncpa [#allocation6], 1
    %125 = vsyncpa [#allocation4], 1

</llo_original>
